<compile_context>
chip_gen: v5e
topology: v5e:2x2
jax: 0.10.0
libtpu: 0.0.40
codegen_flags: <defaults>
</compile_context>

<pallas_src>
import jax
import jax.numpy as jnp
from jax.experimental import pallas as pl
from jax.experimental.pallas import tpu as pltpu


NH = 4                      # n_harmonic_functions (module constant)
E = 3 * NH                  # 12 harmonic args per point
BIG = 3.0e38                # "+inf" sentinel that survives f32 math


# ----------------------------------------------------------------------------
# Kernel 1: fused pairwise squared distances + streaming top-K.
#   grid = (B, N//tn, P//tp); outputs are (B, K, N) (lane-dense), the running
#   top-K lives in the revisited output block across the arbitrary P axis.
# ----------------------------------------------------------------------------
def knn_kernel(ct_ref, pt_ref, pn_ref, dist_ref, idx_ref):
    p_step = pl.program_id(2)
    tp = pt_ref.shape[1]
    tn = ct_ref.shape[2]
    K = dist_ref.shape[1]
    big = jnp.float32(BIG)
    imax = jnp.int32(2147483647)

    @pl.when(p_step == 0)
    def _init():
        dist_ref[0] = jnp.full((K, tn), big, jnp.float32)
        idx_ref[0] = jnp.zeros((K, tn), jnp.int32)

    ct = ct_ref[0]                                    # (3, tn)  query coords^T
    pt = pt_ref[0]                                    # (tp, 3)  point chunk
    pn = pn_ref[0]                                    # (tp, 1)  |pt|^2

    cn = jnp.sum(ct * ct, axis=0, keepdims=True)      # (1, tn)
    # contraction dim is only 3, so this MXU push is cheap; the top-K passes
    # below dominate this kernel.
    d2 = pn + cn - 2.0 * jnp.dot(pt, ct, preferred_element_type=jnp.float32)
    d2 = jnp.maximum(d2, 0.0)                         # (tp, tn)

    riota = jax.lax.broadcasted_iota(jnp.int32, (tp, tn), 0)
    kiota = jax.lax.broadcasted_iota(jnp.int32, (K, tn), 0)
    p_off = p_step * tp

    # chunk-local top-K: 2 sublane reductions per pass over (tp, tn); the
    # chunk index is row-position + chunk offset (no extra gather pass).
    cd = jnp.full((K, tn), big, jnp.float32)
    ci = jnp.zeros((K, tn), jnp.int32)
    d = d2
    for k in range(K):                                # K is small & static
        m = jnp.min(d, axis=0, keepdims=True)                              # (1, tn)
        ar = jnp.min(jnp.where(d == m, riota, tp), axis=0, keepdims=True)  # 1st argmin
        cd = jnp.where(kiota == k, m, cd)
        ci = jnp.where(kiota == k, ar + p_off, ci)
        d = jnp.where(riota == ar, big, d)

    # merge with the running top-K (resident in the output block): K passes
    # over only 2K rows -> negligible next to the chunk passes.
    md = jnp.concatenate([dist_ref[0], cd], axis=0)   # (2K, tn)
    mi = jnp.concatenate([idx_ref[0], ci], axis=0)
    r2 = jax.lax.broadcasted_iota(jnp.int32, (2 * K, tn), 0)
    nd = jnp.full((K, tn), big, jnp.float32)
    ni = jnp.zeros((K, tn), jnp.int32)
    d = md
    for k in range(K):
        m = jnp.min(d, axis=0, keepdims=True)
        ar = jnp.min(jnp.where(d == m, r2, 2 * K), axis=0, keepdims=True)
        sel = jnp.min(jnp.where(r2 == ar, mi, imax), axis=0, keepdims=True)
        nd = jnp.where(kiota == k, m, nd)
        ni = jnp.where(kiota == k, sel, ni)
        d = jnp.where(r2 == ar, big, d)

    dist_ref[0] = nd
    idx_ref[0] = ni


# ----------------------------------------------------------------------------
# Kernel 2: normalize -> harmonic embed -> Linear/ReLU/Linear -> weighted
# K-reduction.  Blocks hold all K neighbours of a tn2-wide query tile; the
# N-axis weight normalizer is precomputed, so N tiles freely.
# ----------------------------------------------------------------------------
def querier_kernel(rel_ref, feat_ref, w_ref, fmm_ref, pb_ref, wsc_ref,
                   w1f_ref, w2_ref, b2_ref, out_ref):
    K = rel_ref.shape[1]
    two_e = wsc_ref.shape[0]                 # 2 * E

    fmm = fmm_ref[...]                        # (3, 2E + H)   [fm | fm | w1_x]
    pb = pb_ref[...]                          # (1, 2E + H)   [phase | b1]
    wsc = wsc_ref[...]                        # (2E, H) bf16  [w1_sin; w1_cos]
    w1f = w1f_ref[...]                        # (Din, H) bf16
    w2 = w2_ref[...]                          # (H, O)  bf16
    b2 = b2_ref[...]                          # (1, O)

    acc = None
    for k in range(K):                        # static unroll over neighbours
        rel = rel_ref[0, k]                   # (tn2, 3)   raw relative pos
        feat = feat_ref[0, k]                 # (tn2, Din) bf16
        wcol = w_ref[0, k]                    # (tn2, 1)   normalized weight

        # F.normalize(dim=-1, eps=1e-12) == x * rsqrt(max(|x|^2, 1e-24))
        ss = jnp.sum(rel * rel, axis=-1, keepdims=True)
        rel = rel * jax.lax.rsqrt(jnp.maximum(ss, 1e-24))

        # merged first matmul against [fm | fm | w1_x]; the bias row carries
        # the sin/cos phases (cos(a) == sin(a + pi/2)) and b1, so the sin/cos
        # branch is a single EUP sin pass over 2E lanes.
        ex = jnp.dot(rel, fmm, preferred_element_type=jnp.float32) + pb
        sc = jnp.sin(ex[:, :two_e])                        # [sin(e) | cos(e)]
        h = ex[:, two_e:]                                  # rel @ w1_x + b1
        h = h + jnp.dot(sc.astype(wsc.dtype), wsc,
                        preferred_element_type=jnp.float32)
        h = h + jnp.dot(feat, w1f, preferred_element_type=jnp.float32)
        h = jnp.maximum(h, 0.0)                            # ReLU
        y = jnp.dot(h.astype(w2.dtype), w2,
                    preferred_element_type=jnp.float32) + b2
        yw = y * wcol                                      # (tn2, O)
        acc = yw if acc is None else acc + yw

    out_ref[0] = acc


# ----------------------------------------------------------------------------
# Wrapper (plain-JAX glue: neighbour gathers, parameter repacking, tiling)
# ----------------------------------------------------------------------------
def _pick_tile(n, cap, quantum):
    """Largest multiple of `quantum` dividing `n` that is <= cap, else n."""
    if n <= cap:
        return n
    t = (cap // quantum) * quantum
    while t >= quantum:
        if n % t == 0:
            return t
        t -= quantum
    return n


def _vmem_limit_bytes():
    # VMEM-aware limit: v5e/v6e have 128 MiB physical, v7x only 64 MiB.
    try:
        return int(pltpu.get_tpu_info().vmem_capacity_bytes * 3 // 4)
    except Exception:
        return 48 * 1024 * 1024


def dynamic_points_querier(coords, pts, emb_table, w1, b1, w2, b2, K):
    B, N, _ = coords.shape
    P = pts.shape[1]
    Din = emb_table.shape[1]
    H = w1.shape[1]
    O = w2.shape[1]
    assert K <= P, "K must not exceed the number of cloud points"
    assert w1.shape[0] == Din + 2 * E + 3

    coords = coords.astype(jnp.float32)
    pts = pts.astype(jnp.float32)

    vmem_limit = _vmem_limit_bytes()
    budget = vmem_limit // 2            # headroom for double-buffered blocks

    # -------- kernel 1: streaming KNN, lane-dense (B, K, N) outputs --------
    tn = _pick_tile(N, 1024, 128)
    tp_cap = max(8, min(512, budget // (32 * tn)))   # ~8 f32 copies of (tp,tn)
    tp = _pick_tile(P, tp_cap, 8)

    coords_t = jnp.transpose(coords, (0, 2, 1))           # (B, 3, N), tiny
    pts_sq = jnp.sum(pts * pts, axis=-1, keepdims=True)   # (B, P, 1)

    dist_t, idx_t = pl.pallas_call(
        knn_kernel,
        out_shape=(jax.ShapeDtypeStruct((B, K, N), jnp.float32),
                   jax.ShapeDtypeStruct((B, K, N), jnp.int32)),
        grid=(B, N // tn, P // tp),
        in_specs=[pl.BlockSpec((1, 3, tn), lambda b, i, p: (b, 0, i)),
                  pl.BlockSpec((1, tp, 3), lambda b, i, p: (b, p, 0)),
                  pl.BlockSpec((1, tp, 1), lambda b, i, p: (b, p, 0))],
        out_specs=(pl.BlockSpec((1, K, tn), lambda b, i, p: (b, 0, i)),
                   pl.BlockSpec((1, K, tn), lambda b, i, p: (b, 0, i))),
        compiler_params=pltpu.CompilerParams(
            dimension_semantics=("parallel", "parallel", "arbitrary"),
            vmem_limit_bytes=vmem_limit),
    )(coords_t, pts, pts_sq)

    # inverse-(squared)-distance weights, normalized over the N axis (torch
    # dim=1).  Pre-reducing here breaks kernel 2's whole-N coupling; exact
    # divides avoid chained approx reciprocals, and the eps clamp guards the
    # 0-distance (coincident point) case.
    inv = 1.0 / jnp.maximum(dist_t, 1e-12)                     # (B, K, N)
    wnorm = inv / jnp.sum(inv, axis=2, keepdims=True)
    w_col = wnorm[..., None]                                   # (B, K, N, 1)

    # TODO(synk): the neighbour gathers remain XLA glue; an in-kernel gather
    # of emb_table/pts rows (jnp.take on a VMEM-resident table) would remove
    # the K-duplicated feature stream entirely.  We halve it with bf16 here.
    nn_k = jax.vmap(lambda p, i: p[i])(pts, idx_t)             # (B, K, N, 3)
    feat_k = emb_table[idx_t].astype(jnp.bfloat16)             # (B, K, N, Din)
    rel_k = coords[:, None, :, :] - nn_k                       # (B, K, N, 3)

    # harmonic frequency matrix fm[i, NH*i + j] = 2**j (logspace, omega_0=1)
    freqs = 2.0 ** jnp.arange(NH, dtype=jnp.float32)
    fm = jnp.zeros((3, E), jnp.float32)
    for i in range(3):
        fm = fm.at[i, NH * i:NH * (i + 1)].set(freqs)

    # split w1 rows by torch's cat order [feat(Din) | sin(E) | cos(E) | x(3)]
    w1f = w1[0:Din].astype(jnp.bfloat16)
    wsc = jnp.concatenate([w1[Din:Din + E], w1[Din + E:Din + 2 * E]],
                          axis=0).astype(jnp.bfloat16)
    w1x = w1[Din + 2 * E:Din + 2 * E + 3].astype(jnp.float32)
    fmm = jnp.concatenate([fm, fm, w1x], axis=1)               # (3, 2E + H)
    phase = jnp.concatenate([jnp.zeros((E,), jnp.float32),
                             jnp.full((E,), jnp.pi / 2, jnp.float32)])
    pb = jnp.concatenate([phase, b1.astype(jnp.float32)]).reshape(1, 2 * E + H)
    w2b = w2.astype(jnp.bfloat16)
    b2_2d = b2.astype(jnp.float32).reshape(1, O)

    # -------- kernel 2: MLP + weighted K-reduction, N tiled ----------------
    row_bytes = K * (3 * (2 * E + H) * 4 + Din * 2 + H * 4 + O * 4 + 64)
    tn2_cap = max(8, min(512, budget // max(1, row_bytes)))
    tn2 = _pick_tile(N, tn2_cap, 128)

    out = pl.pallas_call(
        querier_kernel,
        out_shape=jax.ShapeDtypeStruct((B, N, O), jnp.float32),
        grid=(B, N // tn2),
        in_specs=[
            pl.BlockSpec((1, K, tn2, 3), lambda b, i: (b, 0, i, 0)),    # rel
            pl.BlockSpec((1, K, tn2, Din), lambda b, i: (b, 0, i, 0)),  # feat
            pl.BlockSpec((1, K, tn2, 1), lambda b, i: (b, 0, i, 0)),    # weights
            pl.BlockSpec((3, 2 * E + H), lambda b, i: (0, 0)),          # [fm|fm|w1x]
            pl.BlockSpec((1, 2 * E + H), lambda b, i: (0, 0)),          # [phase|b1]
            pl.BlockSpec((2 * E, H), lambda b, i: (0, 0)),              # [w1s;w1c]
            pl.BlockSpec((Din, H), lambda b, i: (0, 0)),                # w1 feat
            pl.BlockSpec((H, O), lambda b, i: (0, 0)),                  # w2
            pl.BlockSpec((1, O), lambda b, i: (0, 0)),                  # b2
        ],
        out_specs=pl.BlockSpec((1, tn2, O), lambda b, i: (b, i, 0)),
        compiler_params=pltpu.CompilerParams(
            dimension_semantics=("parallel", "parallel"),
            vmem_limit_bytes=vmem_limit),
    )(rel_k, feat_k, w_col, fmm, pb, wsc, w1f, w2b, b2_2d)

    # module returns (B, N, K) squared distances (pytorch3d convention)
    dist = jnp.transpose(dist_t, (0, 2, 1))
    return out, dist


if __name__ == "__main__":
    # module config: in_dim=8, points_number=16, outputs_dim=32 (points_dim == in_dim)
    B, N, P, K = 2, 8, 16, 4
    IN_DIM, OUT_DIM = 8, 32
    EMBED_DIM = 2 * E + 3              # 27
    F_IN = IN_DIM + EMBED_DIM          # 35
    H = 2 * OUT_DIM                    # 64

    key = jax.random.PRNGKey(0)
    ks = jax.random.split(key, 7)

    # forward inputs
    coordinates = jax.random.normal(ks[0], (B, N, 3), jnp.float32)
    points_position = jax.random.normal(ks[1], (B, P, 3), jnp.float32)

    # deterministic synthetic parameters (w1/w2 already in x @ W layout)
    emb_table = jax.random.normal(ks[2], (P, IN_DIM), jnp.float32)          # nn.Embedding(P, in_dim)
    w1 = jax.random.normal(ks[3], (F_IN, H), jnp.float32) / jnp.sqrt(F_IN)  # Linear(F_IN, 2*O)
    b1 = jax.random.normal(ks[4], (H,), jnp.float32) * 0.01
    w2 = jax.random.normal(ks[5], (H, OUT_DIM), jnp.float32) / jnp.sqrt(H)  # Linear(2*O, O)
    b2 = jax.random.normal(ks[6], (OUT_DIM,), jnp.float32) * 0.01

    feats, dist = dynamic_points_querier(
        coordinates, points_position, emb_table, w1, b1, w2, b2, K)
    jax.block_until_ready((feats, dist))

    assert feats.shape == (B, N, OUT_DIM), feats.shape
    assert dist.shape == (B, N, K), dist.shape
    assert bool(jnp.all(jnp.isfinite(feats)))
    assert bool(jnp.all(jnp.isfinite(dist))) and bool(jnp.all(dist >= 0.0))
    print("KERNEL_OK")
</pallas_src>

<mosaic_0001>
module attributes {stable_mosaic.version = 11 : i64} {
  func.func @knn_kernel(%arg0: i32, %arg1: i32, %arg2: i32, %arg3: memref<1x3x8xf32, #tpu.memory_space<vmem>>, %arg4: memref<1x16x3xf32, #tpu.memory_space<vmem>>, %arg5: memref<1x16x1xf32, #tpu.memory_space<vmem>>, %arg6: memref<1x4x8xf32, #tpu.memory_space<vmem>>, %arg7: memref<1x4x8xi32, #tpu.memory_space<vmem>>) attributes {dimension_semantics = [#tpu.dimension_semantics<parallel>, #tpu.dimension_semantics<parallel>, #tpu.dimension_semantics<arbitrary>], iteration_bounds = array<i64: 2, 1, 1>, scalar_prefetch = 0 : i64, scratch_operands = 0 : i64, tpu.core_type = #tpu.core_type<tc>, window_params = [{transform_indices = @transform_0, window_bounds = array<i64: 1, 3, 8>}, {transform_indices = @transform_1, window_bounds = array<i64: 1, 16, 3>}, {transform_indices = @transform_2, window_bounds = array<i64: 1, 16, 1>}, {transform_indices = @transform_3, window_bounds = array<i64: 1, 4, 8>}, {transform_indices = @transform_4, window_bounds = array<i64: 1, 4, 8>}]} {
    %c0_i32 = arith.constant 0 : i32
    %0 = arith.cmpi eq, %arg2, %c0_i32 : i32
    %1 = arith.extui %0 : i1 to i32
    %cst = arith.constant 3.000000e+38 : f32
    %c0_i32_0 = arith.constant 0 : i32
    %2 = arith.cmpi ne, %1, %c0_i32_0 : i32
    scf.if %2 {
      %241 = vector.broadcast %cst : f32 to vector<4x8xf32>
      %c0_78 = arith.constant 0 : index
      %c0_79 = arith.constant 0 : index
      %c0_80 = arith.constant 0 : index
      %242 = vector.load %arg6[%c0_78, %c0_79, %c0_80] : memref<1x4x8xf32, #tpu.memory_space<vmem>>, vector<1x4x8xf32>
      %243 = vector.shape_cast %242 : vector<1x4x8xf32> to vector<4x8xf32>
      %244 = vector.shape_cast %241 : vector<4x8xf32> to vector<1x4x8xf32>
      tpu.vector_store %arg6[%c0_78, %c0_79, %c0_80], %244 {strides = array<i32>} : memref<1x4x8xf32, #tpu.memory_space<vmem>>, vector<1x4x8xf32>,
      %c0_i32_81 = arith.constant 0 : i32
      %245 = vector.broadcast %c0_i32_81 : i32 to vector<4x8xi32>
      %c0_82 = arith.constant 0 : index
      %c0_83 = arith.constant 0 : index
      %c0_84 = arith.constant 0 : index
      %246 = vector.load %arg7[%c0_82, %c0_83, %c0_84] : memref<1x4x8xi32, #tpu.memory_space<vmem>>, vector<1x4x8xi32>
      %247 = vector.shape_cast %246 : vector<1x4x8xi32> to vector<4x8xi32>
      %248 = vector.shape_cast %245 : vector<4x8xi32> to vector<1x4x8xi32>
      tpu.vector_store %arg7[%c0_82, %c0_83, %c0_84], %248 {strides = array<i32>} : memref<1x4x8xi32, #tpu.memory_space<vmem>>, vector<1x4x8xi32>,
    } else {
    }
    %c0 = arith.constant 0 : index
    %c0_1 = arith.constant 0 : index
    %c0_2 = arith.constant 0 : index
    %3 = vector.load %arg3[%c0, %c0_1, %c0_2] : memref<1x3x8xf32, #tpu.memory_space<vmem>>, vector<1x3x8xf32>
    %4 = vector.shape_cast %3 : vector<1x3x8xf32> to vector<3x8xf32>
    %c0_3 = arith.constant 0 : index
    %c0_4 = arith.constant 0 : index
    %c0_5 = arith.constant 0 : index
    %5 = vector.load %arg4[%c0_3, %c0_4, %c0_5] : memref<1x16x3xf32, #tpu.memory_space<vmem>>, vector<1x16x3xf32>
    %6 = vector.shape_cast %5 : vector<1x16x3xf32> to vector<16x3xf32>
    %c0_6 = arith.constant 0 : index
    %c0_7 = arith.constant 0 : index
    %c0_8 = arith.constant 0 : index
    %7 = vector.load %arg5[%c0_6, %c0_7, %c0_8] : memref<1x16x1xf32, #tpu.memory_space<vmem>>, vector<1x16x1xf32>
    %8 = vector.shape_cast %7 : vector<1x16x1xf32> to vector<16x1xf32>
    %9 = arith.mulf %4, %4 : vector<3x8xf32>
    %cst_9 = arith.constant dense<0.000000e+00> : vector<8xf32>
    %10 = vector.multi_reduction <add>, %9, %cst_9 [0] : vector<3x8xf32> to vector<8xf32>
    %11 = vector.shape_cast %10 : vector<8xf32> to vector<1x8xf32>
    %12 = vector.broadcast %8 : vector<16x1xf32> to vector<16x8xf32>
    %13 = vector.broadcast %11 : vector<1x8xf32> to vector<16x8xf32>
    %14 = arith.addf %12, %13 : vector<16x8xf32>
    %cst_10 = arith.constant dense<0.000000e+00> : vector<16x8xf32>
    %15 = tpu.matmul %6, %4, %cst_10 {dimension_numbers = #tpu.dot_dimension_numbers<[1], [0], [0], [1], [0, 0, 1, 1], [], []>} : vector<16x3xf32>, vector<3x8xf32>, vector<16x8xf32> -> vector<16x8xf32>
    %cst_11 = arith.constant 2.000000e+00 : f32
    %16 = vector.broadcast %cst_11 : f32 to vector<16x8xf32>
    %17 = arith.mulf %16, %15 : vector<16x8xf32>
    %18 = arith.subf %14, %17 : vector<16x8xf32>
    %cst_12 = arith.constant 0.000000e+00 : f32
    %19 = vector.broadcast %cst_12 : f32 to vector<16x8xf32>
    %20 = arith.maximumf %18, %19 : vector<16x8xf32>
    %21 = tpu.iota {dimensions = array<i32: 0>} : vector<16x8xi32>
    %22 = tpu.iota {dimensions = array<i32: 0>} : vector<4x8xi32>
    %c16_i32 = arith.constant 16 : i32
    %23 = arith.muli %arg2, %c16_i32 : i32
    %cst_13 = arith.constant 3.000000e+38 : f32
    %24 = vector.broadcast %cst_13 : f32 to vector<4x8xf32>
    %c0_i32_14 = arith.constant 0 : i32
    %25 = vector.broadcast %c0_i32_14 : i32 to vector<4x8xi32>
    %cst_15 = arith.constant dense<0x7F800000> : vector<8xf32>
    %26 = vector.multi_reduction <minimumf>, %20, %cst_15 [0] : vector<16x8xf32> to vector<8xf32>
    %27 = vector.shape_cast %26 : vector<8xf32> to vector<1x8xf32>
    %28 = vector.broadcast %27 : vector<1x8xf32> to vector<16x8xf32>
    %29 = arith.cmpf oeq, %20, %28 : vector<16x8xf32>
    %c16_i32_16 = arith.constant 16 : i32
    %30 = vector.broadcast %c16_i32_16 : i32 to vector<16x8xi32>
    %31 = arith.select %29, %21, %30 : vector<16x8xi1>, vector<16x8xi32>
    %cst_17 = arith.constant dense<2147483647> : vector<8xi32>
    %32 = vector.multi_reduction <minsi>, %31, %cst_17 [0] : vector<16x8xi32> to vector<8xi32>
    %33 = vector.shape_cast %32 : vector<8xi32> to vector<1x8xi32>
    %c0_i32_18 = arith.constant 0 : i32
    %34 = vector.broadcast %c0_i32_18 : i32 to vector<4x8xi32>
    %35 = arith.cmpi eq, %22, %34 : vector<4x8xi32>
    %36 = vector.shape_cast %27 : vector<1x8xf32> to vector<1x8xf32>
    %37 = vector.broadcast %36 : vector<1x8xf32> to vector<4x8xf32>
    %38 = arith.select %35, %37, %24 : vector<4x8xi1>, vector<4x8xf32>
    %c0_i32_19 = arith.constant 0 : i32
    %39 = vector.broadcast %c0_i32_19 : i32 to vector<4x8xi32>
    %40 = arith.cmpi eq, %22, %39 : vector<4x8xi32>
    %41 = vector.broadcast %23 : i32 to vector<1x8xi32>
    %42 = arith.addi %33, %41 : vector<1x8xi32>
    %43 = vector.shape_cast %42 : vector<1x8xi32> to vector<1x8xi32>
    %44 = vector.broadcast %43 : vector<1x8xi32> to vector<4x8xi32>
    %45 = arith.select %40, %44, %25 : vector<4x8xi1>, vector<4x8xi32>
    %46 = vector.broadcast %33 : vector<1x8xi32> to vector<16x8xi32>
    %47 = arith.cmpi eq, %21, %46 : vector<16x8xi32>
    %cst_20 = arith.constant 3.000000e+38 : f32
    %48 = vector.broadcast %cst_20 : f32 to vector<16x8xf32>
    %49 = arith.select %47, %48, %20 : vector<16x8xi1>, vector<16x8xf32>
    %cst_21 = arith.constant dense<0x7F800000> : vector<8xf32>
    %50 = vector.multi_reduction <minimumf>, %49, %cst_21 [0] : vector<16x8xf32> to vector<8xf32>
    %51 = vector.shape_cast %50 : vector<8xf32> to vector<1x8xf32>
    %52 = vector.broadcast %51 : vector<1x8xf32> to vector<16x8xf32>
    %53 = arith.cmpf oeq, %49, %52 : vector<16x8xf32>
    %c16_i32_22 = arith.constant 16 : i32
    %54 = vector.broadcast %c16_i32_22 : i32 to vector<16x8xi32>
    %55 = arith.select %53, %21, %54 : vector<16x8xi1>, vector<16x8xi32>
    %cst_23 = arith.constant dense<2147483647> : vector<8xi32>
    %56 = vector.multi_reduction <minsi>, %55, %cst_23 [0] : vector<16x8xi32> to vector<8xi32>
    %57 = vector.shape_cast %56 : vector<8xi32> to vector<1x8xi32>
    %c1_i32 = arith.constant 1 : i32
    %58 = vector.broadcast %c1_i32 : i32 to vector<4x8xi32>
    %59 = arith.cmpi eq, %22, %58 : vector<4x8xi32>
    %60 = vector.shape_cast %51 : vector<1x8xf32> to vector<1x8xf32>
    %61 = vector.broadcast %60 : vector<1x8xf32> to vector<4x8xf32>
    %62 = arith.select %59, %61, %38 : vector<4x8xi1>, vector<4x8xf32>
    %c1_i32_24 = arith.constant 1 : i32
    %63 = vector.broadcast %c1_i32_24 : i32 to vector<4x8xi32>
    %64 = arith.cmpi eq, %22, %63 : vector<4x8xi32>
    %65 = vector.broadcast %23 : i32 to vector<1x8xi32>
    %66 = arith.addi %57, %65 : vector<1x8xi32>
    %67 = vector.shape_cast %66 : vector<1x8xi32> to vector<1x8xi32>
    %68 = vector.broadcast %67 : vector<1x8xi32> to vector<4x8xi32>
    %69 = arith.select %64, %68, %45 : vector<4x8xi1>, vector<4x8xi32>
    %70 = vector.broadcast %57 : vector<1x8xi32> to vector<16x8xi32>
    %71 = arith.cmpi eq, %21, %70 : vector<16x8xi32>
    %cst_25 = arith.constant 3.000000e+38 : f32
    %72 = vector.broadcast %cst_25 : f32 to vector<16x8xf32>
    %73 = arith.select %71, %72, %49 : vector<16x8xi1>, vector<16x8xf32>
    %cst_26 = arith.constant dense<0x7F800000> : vector<8xf32>
    %74 = vector.multi_reduction <minimumf>, %73, %cst_26 [0] : vector<16x8xf32> to vector<8xf32>
    %75 = vector.shape_cast %74 : vector<8xf32> to vector<1x8xf32>
    %76 = vector.broadcast %75 : vector<1x8xf32> to vector<16x8xf32>
    %77 = arith.cmpf oeq, %73, %76 : vector<16x8xf32>
    %c16_i32_27 = arith.constant 16 : i32
    %78 = vector.broadcast %c16_i32_27 : i32 to vector<16x8xi32>
    %79 = arith.select %77, %21, %78 : vector<16x8xi1>, vector<16x8xi32>
    %cst_28 = arith.constant dense<2147483647> : vector<8xi32>
    %80 = vector.multi_reduction <minsi>, %79, %cst_28 [0] : vector<16x8xi32> to vector<8xi32>
    %81 = vector.shape_cast %80 : vector<8xi32> to vector<1x8xi32>
    %c2_i32 = arith.constant 2 : i32
    %82 = vector.broadcast %c2_i32 : i32 to vector<4x8xi32>
    %83 = arith.cmpi eq, %22, %82 : vector<4x8xi32>
    %84 = vector.shape_cast %75 : vector<1x8xf32> to vector<1x8xf32>
    %85 = vector.broadcast %84 : vector<1x8xf32> to vector<4x8xf32>
    %86 = arith.select %83, %85, %62 : vector<4x8xi1>, vector<4x8xf32>
    %c2_i32_29 = arith.constant 2 : i32
    %87 = vector.broadcast %c2_i32_29 : i32 to vector<4x8xi32>
    %88 = arith.cmpi eq, %22, %87 : vector<4x8xi32>
    %89 = vector.broadcast %23 : i32 to vector<1x8xi32>
    %90 = arith.addi %81, %89 : vector<1x8xi32>
    %91 = vector.shape_cast %90 : vector<1x8xi32> to vector<1x8xi32>
    %92 = vector.broadcast %91 : vector<1x8xi32> to vector<4x8xi32>
    %93 = arith.select %88, %92, %69 : vector<4x8xi1>, vector<4x8xi32>
    %94 = vector.broadcast %81 : vector<1x8xi32> to vector<16x8xi32>
    %95 = arith.cmpi eq, %21, %94 : vector<16x8xi32>
    %cst_30 = arith.constant 3.000000e+38 : f32
    %96 = vector.broadcast %cst_30 : f32 to vector<16x8xf32>
    %97 = arith.select %95, %96, %73 : vector<16x8xi1>, vector<16x8xf32>
    %cst_31 = arith.constant dense<0x7F800000> : vector<8xf32>
    %98 = vector.multi_reduction <minimumf>, %97, %cst_31 [0] : vector<16x8xf32> to vector<8xf32>
    %99 = vector.shape_cast %98 : vector<8xf32> to vector<1x8xf32>
    %100 = vector.broadcast %99 : vector<1x8xf32> to vector<16x8xf32>
    %101 = arith.cmpf oeq, %97, %100 : vector<16x8xf32>
    %c16_i32_32 = arith.constant 16 : i32
    %102 = vector.broadcast %c16_i32_32 : i32 to vector<16x8xi32>
    %103 = arith.select %101, %21, %102 : vector<16x8xi1>, vector<16x8xi32>
    %cst_33 = arith.constant dense<2147483647> : vector<8xi32>
    %104 = vector.multi_reduction <minsi>, %103, %cst_33 [0] : vector<16x8xi32> to vector<8xi32>
    %105 = vector.shape_cast %104 : vector<8xi32> to vector<1x8xi32>
    %c3_i32 = arith.constant 3 : i32
    %106 = vector.broadcast %c3_i32 : i32 to vector<4x8xi32>
    %107 = arith.cmpi eq, %22, %106 : vector<4x8xi32>
    %108 = vector.shape_cast %99 : vector<1x8xf32> to vector<1x8xf32>
    %109 = vector.broadcast %108 : vector<1x8xf32> to vector<4x8xf32>
    %110 = arith.select %107, %109, %86 : vector<4x8xi1>, vector<4x8xf32>
    %c3_i32_34 = arith.constant 3 : i32
    %111 = vector.broadcast %c3_i32_34 : i32 to vector<4x8xi32>
    %112 = arith.cmpi eq, %22, %111 : vector<4x8xi32>
    %113 = vector.broadcast %23 : i32 to vector<1x8xi32>
    %114 = arith.addi %105, %113 : vector<1x8xi32>
    %115 = vector.shape_cast %114 : vector<1x8xi32> to vector<1x8xi32>
    %116 = vector.broadcast %115 : vector<1x8xi32> to vector<4x8xi32>
    %117 = arith.select %112, %116, %93 : vector<4x8xi1>, vector<4x8xi32>
    %c0_35 = arith.constant 0 : index
    %c0_36 = arith.constant 0 : index
    %c0_37 = arith.constant 0 : index
    %118 = vector.load %arg6[%c0_35, %c0_36, %c0_37] : memref<1x4x8xf32, #tpu.memory_space<vmem>>, vector<1x4x8xf32>
    %119 = vector.shape_cast %118 : vector<1x4x8xf32> to vector<4x8xf32>
    %120 = tpu.concatenate %119, %110 in 0 : vector<4x8xf32>, vector<4x8xf32> -> vector<8x8xf32>
    %c0_38 = arith.constant 0 : index
    %c0_39 = arith.constant 0 : index
    %c0_40 = arith.constant 0 : index
    %121 = vector.load %arg7[%c0_38, %c0_39, %c0_40] : memref<1x4x8xi32, #tpu.memory_space<vmem>>, vector<1x4x8xi32>
    %122 = vector.shape_cast %121 : vector<1x4x8xi32> to vector<4x8xi32>
    %123 = tpu.concatenate %122, %117 in 0 : vector<4x8xi32>, vector<4x8xi32> -> vector<8x8xi32>
    %124 = tpu.iota {dimensions = array<i32: 0>} : vector<8x8xi32>
    %cst_41 = arith.constant 3.000000e+38 : f32
    %125 = vector.broadcast %cst_41 : f32 to vector<4x8xf32>
    %c0_i32_42 = arith.constant 0 : i32
    %126 = vector.broadcast %c0_i32_42 : i32 to vector<4x8xi32>
    %cst_43 = arith.constant dense<0x7F800000> : vector<8xf32>
    %127 = vector.multi_reduction <minimumf>, %120, %cst_43 [0] : vector<8x8xf32> to vector<8xf32>
    %128 = vector.shape_cast %127 : vector<8xf32> to vector<1x8xf32>
    %129 = vector.broadcast %128 : vector<1x8xf32> to vector<8x8xf32>
    %130 = arith.cmpf oeq, %120, %129 : vector<8x8xf32>
    %c8_i32 = arith.constant 8 : i32
    %131 = vector.broadcast %c8_i32 : i32 to vector<8x8xi32>
    %132 = arith.select %130, %124, %131 : vector<8x8xi1>, vector<8x8xi32>
    %cst_44 = arith.constant dense<2147483647> : vector<8xi32>
    %133 = vector.multi_reduction <minsi>, %132, %cst_44 [0] : vector<8x8xi32> to vector<8xi32>
    %134 = vector.shape_cast %133 : vector<8xi32> to vector<1x8xi32>
    %135 = vector.broadcast %134 : vector<1x8xi32> to vector<8x8xi32>
    %136 = arith.cmpi eq, %124, %135 : vector<8x8xi32>
    %c2147483647_i32 = arith.constant 2147483647 : i32
    %137 = vector.broadcast %c2147483647_i32 : i32 to vector<8x8xi32>
    %138 = arith.select %136, %123, %137 : vector<8x8xi1>, vector<8x8xi32>
    %cst_45 = arith.constant dense<2147483647> : vector<8xi32>
    %139 = vector.multi_reduction <minsi>, %138, %cst_45 [0] : vector<8x8xi32> to vector<8xi32>
    %140 = vector.shape_cast %139 : vector<8xi32> to vector<1x8xi32>
    %c0_i32_46 = arith.constant 0 : i32
    %141 = vector.broadcast %c0_i32_46 : i32 to vector<4x8xi32>
    %142 = arith.cmpi eq, %22, %141 : vector<4x8xi32>
    %143 = vector.shape_cast %128 : vector<1x8xf32> to vector<1x8xf32>
    %144 = vector.broadcast %143 : vector<1x8xf32> to vector<4x8xf32>
    %145 = arith.select %142, %144, %125 : vector<4x8xi1>, vector<4x8xf32>
    %c0_i32_47 = arith.constant 0 : i32
    %146 = vector.broadcast %c0_i32_47 : i32 to vector<4x8xi32>
    %147 = arith.cmpi eq, %22, %146 : vector<4x8xi32>
    %148 = vector.shape_cast %140 : vector<1x8xi32> to vector<1x8xi32>
    %149 = vector.broadcast %148 : vector<1x8xi32> to vector<4x8xi32>
    %150 = arith.select %147, %149, %126 : vector<4x8xi1>, vector<4x8xi32>
    %151 = vector.broadcast %134 : vector<1x8xi32> to vector<8x8xi32>
    %152 = arith.cmpi eq, %124, %151 : vector<8x8xi32>
    %cst_48 = arith.constant 3.000000e+38 : f32
    %153 = vector.broadcast %cst_48 : f32 to vector<8x8xf32>
    %154 = arith.select %152, %153, %120 : vector<8x8xi1>, vector<8x8xf32>
    %cst_49 = arith.constant dense<0x7F800000> : vector<8xf32>
    %155 = vector.multi_reduction <minimumf>, %154, %cst_49 [0] : vector<8x8xf32> to vector<8xf32>
    %156 = vector.shape_cast %155 : vector<8xf32> to vector<1x8xf32>
    %157 = vector.broadcast %156 : vector<1x8xf32> to vector<8x8xf32>
    %158 = arith.cmpf oeq, %154, %157 : vector<8x8xf32>
    %c8_i32_50 = arith.constant 8 : i32
    %159 = vector.broadcast %c8_i32_50 : i32 to vector<8x8xi32>
    %160 = arith.select %158, %124, %159 : vector<8x8xi1>, vector<8x8xi32>
    %cst_51 = arith.constant dense<2147483647> : vector<8xi32>
    %161 = vector.multi_reduction <minsi>, %160, %cst_51 [0] : vector<8x8xi32> to vector<8xi32>
    %162 = vector.shape_cast %161 : vector<8xi32> to vector<1x8xi32>
    %163 = vector.broadcast %162 : vector<1x8xi32> to vector<8x8xi32>
    %164 = arith.cmpi eq, %124, %163 : vector<8x8xi32>
    %c2147483647_i32_52 = arith.constant 2147483647 : i32
    %165 = vector.broadcast %c2147483647_i32_52 : i32 to vector<8x8xi32>
    %166 = arith.select %164, %123, %165 : vector<8x8xi1>, vector<8x8xi32>
    %cst_53 = arith.constant dense<2147483647> : vector<8xi32>
    %167 = vector.multi_reduction <minsi>, %166, %cst_53 [0] : vector<8x8xi32> to vector<8xi32>
    %168 = vector.shape_cast %167 : vector<8xi32> to vector<1x8xi32>
    %c1_i32_54 = arith.constant 1 : i32
    %169 = vector.broadcast %c1_i32_54 : i32 to vector<4x8xi32>
    %170 = arith.cmpi eq, %22, %169 : vector<4x8xi32>
    %171 = vector.shape_cast %156 : vector<1x8xf32> to vector<1x8xf32>
    %172 = vector.broadcast %171 : vector<1x8xf32> to vector<4x8xf32>
    %173 = arith.select %170, %172, %145 : vector<4x8xi1>, vector<4x8xf32>
    %c1_i32_55 = arith.constant 1 : i32
    %174 = vector.broadcast %c1_i32_55 : i32 to vector<4x8xi32>
    %175 = arith.cmpi eq, %22, %174 : vector<4x8xi32>
    %176 = vector.shape_cast %168 : vector<1x8xi32> to vector<1x8xi32>
    %177 = vector.broadcast %176 : vector<1x8xi32> to vector<4x8xi32>
    %178 = arith.select %175, %177, %150 : vector<4x8xi1>, vector<4x8xi32>
    %179 = vector.broadcast %162 : vector<1x8xi32> to vector<8x8xi32>
    %180 = arith.cmpi eq, %124, %179 : vector<8x8xi32>
    %cst_56 = arith.constant 3.000000e+38 : f32
    %181 = vector.broadcast %cst_56 : f32 to vector<8x8xf32>
    %182 = arith.select %180, %181, %154 : vector<8x8xi1>, vector<8x8xf32>
    %cst_57 = arith.constant dense<0x7F800000> : vector<8xf32>
    %183 = vector.multi_reduction <minimumf>, %182, %cst_57 [0] : vector<8x8xf32> to vector<8xf32>
    %184 = vector.shape_cast %183 : vector<8xf32> to vector<1x8xf32>
    %185 = vector.broadcast %184 : vector<1x8xf32> to vector<8x8xf32>
    %186 = arith.cmpf oeq, %182, %185 : vector<8x8xf32>
    %c8_i32_58 = arith.constant 8 : i32
    %187 = vector.broadcast %c8_i32_58 : i32 to vector<8x8xi32>
    %188 = arith.select %186, %124, %187 : vector<8x8xi1>, vector<8x8xi32>
    %cst_59 = arith.constant dense<2147483647> : vector<8xi32>
    %189 = vector.multi_reduction <minsi>, %188, %cst_59 [0] : vector<8x8xi32> to vector<8xi32>
    %190 = vector.shape_cast %189 : vector<8xi32> to vector<1x8xi32>
    %191 = vector.broadcast %190 : vector<1x8xi32> to vector<8x8xi32>
    %192 = arith.cmpi eq, %124, %191 : vector<8x8xi32>
    %c2147483647_i32_60 = arith.constant 2147483647 : i32
    %193 = vector.broadcast %c2147483647_i32_60 : i32 to vector<8x8xi32>
    %194 = arith.select %192, %123, %193 : vector<8x8xi1>, vector<8x8xi32>
    %cst_61 = arith.constant dense<2147483647> : vector<8xi32>
    %195 = vector.multi_reduction <minsi>, %194, %cst_61 [0] : vector<8x8xi32> to vector<8xi32>
    %196 = vector.shape_cast %195 : vector<8xi32> to vector<1x8xi32>
    %c2_i32_62 = arith.constant 2 : i32
    %197 = vector.broadcast %c2_i32_62 : i32 to vector<4x8xi32>
    %198 = arith.cmpi eq, %22, %197 : vector<4x8xi32>
    %199 = vector.shape_cast %184 : vector<1x8xf32> to vector<1x8xf32>
    %200 = vector.broadcast %199 : vector<1x8xf32> to vector<4x8xf32>
    %201 = arith.select %198, %200, %173 : vector<4x8xi1>, vector<4x8xf32>
    %c2_i32_63 = arith.constant 2 : i32
    %202 = vector.broadcast %c2_i32_63 : i32 to vector<4x8xi32>
    %203 = arith.cmpi eq, %22, %202 : vector<4x8xi32>
    %204 = vector.shape_cast %196 : vector<1x8xi32> to vector<1x8xi32>
    %205 = vector.broadcast %204 : vector<1x8xi32> to vector<4x8xi32>
    %206 = arith.select %203, %205, %178 : vector<4x8xi1>, vector<4x8xi32>
    %207 = vector.broadcast %190 : vector<1x8xi32> to vector<8x8xi32>
    %208 = arith.cmpi eq, %124, %207 : vector<8x8xi32>
    %cst_64 = arith.constant 3.000000e+38 : f32
    %209 = vector.broadcast %cst_64 : f32 to vector<8x8xf32>
    %210 = arith.select %208, %209, %182 : vector<8x8xi1>, vector<8x8xf32>
    %cst_65 = arith.constant dense<0x7F800000> : vector<8xf32>
    %211 = vector.multi_reduction <minimumf>, %210, %cst_65 [0] : vector<8x8xf32> to vector<8xf32>
    %212 = vector.shape_cast %211 : vector<8xf32> to vector<1x8xf32>
    %213 = vector.broadcast %212 : vector<1x8xf32> to vector<8x8xf32>
    %214 = arith.cmpf oeq, %210, %213 : vector<8x8xf32>
    %c8_i32_66 = arith.constant 8 : i32
    %215 = vector.broadcast %c8_i32_66 : i32 to vector<8x8xi32>
    %216 = arith.select %214, %124, %215 : vector<8x8xi1>, vector<8x8xi32>
    %cst_67 = arith.constant dense<2147483647> : vector<8xi32>
    %217 = vector.multi_reduction <minsi>, %216, %cst_67 [0] : vector<8x8xi32> to vector<8xi32>
    %218 = vector.shape_cast %217 : vector<8xi32> to vector<1x8xi32>
    %219 = vector.broadcast %218 : vector<1x8xi32> to vector<8x8xi32>
    %220 = arith.cmpi eq, %124, %219 : vector<8x8xi32>
    %c2147483647_i32_68 = arith.constant 2147483647 : i32
    %221 = vector.broadcast %c2147483647_i32_68 : i32 to vector<8x8xi32>
    %222 = arith.select %220, %123, %221 : vector<8x8xi1>, vector<8x8xi32>
    %cst_69 = arith.constant dense<2147483647> : vector<8xi32>
    %223 = vector.multi_reduction <minsi>, %222, %cst_69 [0] : vector<8x8xi32> to vector<8xi32>
    %224 = vector.shape_cast %223 : vector<8xi32> to vector<1x8xi32>
    %c3_i32_70 = arith.constant 3 : i32
    %225 = vector.broadcast %c3_i32_70 : i32 to vector<4x8xi32>
    %226 = arith.cmpi eq, %22, %225 : vector<4x8xi32>
    %227 = vector.shape_cast %212 : vector<1x8xf32> to vector<1x8xf32>
    %228 = vector.broadcast %227 : vector<1x8xf32> to vector<4x8xf32>
    %229 = arith.select %226, %228, %201 : vector<4x8xi1>, vector<4x8xf32>
    %c3_i32_71 = arith.constant 3 : i32
    %230 = vector.broadcast %c3_i32_71 : i32 to vector<4x8xi32>
    %231 = arith.cmpi eq, %22, %230 : vector<4x8xi32>
    %232 = vector.shape_cast %224 : vector<1x8xi32> to vector<1x8xi32>
    %233 = vector.broadcast %232 : vector<1x8xi32> to vector<4x8xi32>
    %234 = arith.select %231, %233, %206 : vector<4x8xi1>, vector<4x8xi32>
    %c0_72 = arith.constant 0 : index
    %c0_73 = arith.constant 0 : index
    %c0_74 = arith.constant 0 : index
    %235 = vector.load %arg6[%c0_72, %c0_73, %c0_74] : memref<1x4x8xf32, #tpu.memory_space<vmem>>, vector<1x4x8xf32>
    %236 = vector.shape_cast %235 : vector<1x4x8xf32> to vector<4x8xf32>
    %237 = vector.shape_cast %229 : vector<4x8xf32> to vector<1x4x8xf32>
    tpu.vector_store %arg6[%c0_72, %c0_73, %c0_74], %237 {strides = array<i32>} : memref<1x4x8xf32, #tpu.memory_space<vmem>>, vector<1x4x8xf32>,
    %c0_75 = arith.constant 0 : index
    %c0_76 = arith.constant 0 : index
    %c0_77 = arith.constant 0 : index
    %238 = vector.load %arg7[%c0_75, %c0_76, %c0_77] : memref<1x4x8xi32, #tpu.memory_space<vmem>>, vector<1x4x8xi32>
    %239 = vector.shape_cast %238 : vector<1x4x8xi32> to vector<4x8xi32>
    %240 = vector.shape_cast %234 : vector<4x8xi32> to vector<1x4x8xi32>
    tpu.vector_store %arg7[%c0_75, %c0_76, %c0_77], %240 {strides = array<i32>} : memref<1x4x8xi32, #tpu.memory_space<vmem>>, vector<1x4x8xi32>,
    return
  }
  func.func @transform_0(%arg0: i32, %arg1: i32, %arg2: i32) -> (i32, i32, i32) {
    %c0_i32 = arith.constant 0 : i32
    %c0_i32_0 = arith.constant 0 : i32
    return %arg0, %c0_i32, %arg1 : i32, i32, i32
  }
  func.func @transform_1(%arg0: i32, %arg1: i32, %arg2: i32) -> (i32, i32, i32) {
    %c0_i32 = arith.constant 0 : i32
    %c0_i32_0 = arith.constant 0 : i32
    return %arg0, %arg2, %c0_i32 : i32, i32, i32
  }
  func.func @transform_2(%arg0: i32, %arg1: i32, %arg2: i32) -> (i32, i32, i32) {
    %c0_i32 = arith.constant 0 : i32
    %c0_i32_0 = arith.constant 0 : i32
    return %arg0, %arg2, %c0_i32 : i32, i32, i32
  }
  func.func @transform_3(%arg0: i32, %arg1: i32, %arg2: i32) -> (i32, i32, i32) {
    %c0_i32 = arith.constant 0 : i32
    %c0_i32_0 = arith.constant 0 : i32
    return %arg0, %c0_i32, %arg1 : i32, i32, i32
  }
  func.func @transform_4(%arg0: i32, %arg1: i32, %arg2: i32) -> (i32, i32, i32) {
    %c0_i32 = arith.constant 0 : i32
    %c0_i32_0 = arith.constant 0 : i32
    return %arg0, %c0_i32, %arg1 : i32, i32, i32
  }
}

</mosaic_0001>

<llo_original>
// kernel: tpu_custom_call.1
$region0: #{tpu_custom_call.1}
  #allocation0 [shape = 'u32[]', space=smem, size = 0x4, offset = 0x4, fixed_abs, tag = 'smem constant byte address 0x4 - core index']
  #allocation1 [shape = 'u32[72,128]{1,0:T(1,128)}', space=vmem, size = 0x9000, scoped, tag = 'internal scratch']
  %s0 = inlined_call_operand.vmem [shape: f32[2,3,8], index: 0, kind: input, shape index: {}]
  %s1 = inlined_call_operand.vmem [shape: f32[2,16,3], index: 1, kind: input, shape index: {}]
  %s2 = inlined_call_operand.vmem [shape: f32[2,16,1], index: 2, kind: input, shape index: {}]
  %s3 = inlined_call_operand.hbm [shape: f32[2,4,8], index: 3, kind: output, shape index: {0}]
  %s4 = inlined_call_operand.hbm [shape: s32[2,4,8], index: 4, kind: output, shape index: {1}]
  %5 = xla_tuple %s3, %s4
  %s6 = sld [smem:[#allocation0]]
  $region57: #{tpu_custom_call.1} parent=0
    _
  %s8 = ssub.s32 1, %s6
  %s9 = scalar_select 0, %s8, %s6
  $region1: #{tpu_custom_call.1} parent=0
    #allocation2 [shape = 'u8[4096]{0}', space=vmem, size = 0x1000, scoped, tag = 'output window, operand 0']
    #allocation3 [shape = 's32[2]{0}', space=sflag, size = 0x8, scoped, tag = 'scoped memory for tpu_custom_call.1']
    #allocation4 [shape = 'u8[4096]{0}', space=vmem, size = 0x1000, scoped, tag = 'output window, operand 1']
    #allocation5 [shape = 's32[2]{0}', space=sflag, size = 0x8, scoped, tag = 'scoped memory for tpu_custom_call.1']
    %10 = vsyncpa [#allocation3], 0
    %s11 = scalar_lea.sflag [#allocation3], 1
    %12 = vsyncpa %s11, 0
    %13 = vsyncpa [#allocation5], 0
    %s14 = scalar_lea.sflag [#allocation5], 1
    %15 = vsyncpa %s14, 0
    loop: start=0, step=1, limit=4
    $region2: #{tpu_custom_call.1} parent=1 // loop_pre_header
      _
    $region3: #{tpu_custom_call.1} parent=1 // loop_header
      %s17 = sphi 0, %s21
      %p18 = scmp.ge.s32.totalorder %s17, 4
      %s24 = sphi 0, %s43
      %s25 = sphi 0, %s39
      %s26 = sphi 0, %s35
      %s27 = sphi 0, %s24
      %s28 = sphi 0, %s25
      %s29 = sphi 0, %s26
      %s30 = sphi 0, %s27
      %s31 = sphi 0, %s28
      %s32 = sphi 0, %s29
      %s48 = sphi 0, %s50
      %s51 = sphi 0, %s48
      %s52 = sphi 0, %s51
      %s68 = sphi 0, %s52
      %s76 = sphi 0, %s78
      %s79 = sphi 0, %s76
      %s80 = sphi 0, %s79
      %s96 = sphi 0, %s80
      %s104 = sphi 0, %s106
      %s107 = sphi 0, %s104
      %s108 = sphi 0, %s107
      %s124 = sphi 0, %s108
      %s132 = sphi 0, %s134
      %s135 = sphi 0, %s132
      %s136 = sphi 0, %s135
      %s152 = sphi 0, %s136
      %s160 = sphi 0, %s162
      %s163 = sphi 0, %s160
      %s164 = sphi 0, %s163
      %s180 = sphi 0, %s164
    $region4: #{tpu_custom_call.1} parent=1 // loop_header_branch
      %20 = sbr.rel (%p18) target = $region8
    $region5: #{tpu_custom_call.1} parent=1 // loop_body
      %s22 = ssub.s32 %s17, 1
      %s23 = ssub.s32 %s17, 2
      %s33 = sadd.s32 1, %s26
      %p34 = scmp.ge.s32.totalorder %s33, 1
      %s35 = scalar_select %p34, 0, %s33
      %s36 = sadd.s32 1, %s25
      %s37 = scalar_select %p34, %s36, %s25
      %p38 = scmp.ge.s32.totalorder %s37, 1
      %s39 = scalar_select %p38, 0, %s37
      %s40 = sadd.s32 1, %s24
      %s41 = scalar_select %p38, %s40, %s24
      %p42 = scmp.ge.s32.totalorder %s41, 2
      %s43 = scalar_select %p42, 0, %s41
      %s44 = ssub.s32 %s24, %s43
      %s45 = ssub.s32 %s25, %s39
      %s46 = sor.u32 %s44, %s45
      %p47 = scmp.eq.s32.totalorder %s46, 0
      %s49 = sadd.s32 %s48, 1
      %s50 = scalar_select %p47, %s48, %s49
      %p53 = pneg %p47
      %p54 = scmp.eq.s32.totalorder %s17, 1
      %p55 = por %p53, %p54
      %p56 = scmp.ne.s32.totalorder %s48, %s51
      %p57 = scmp.eq.s32.totalorder %s17, 0
      %p58 = por %p56, %p57
      %p59 = scmp.ne.s32.totalorder %s48, %s51
      %p60 = scmp.eq.s32.totalorder %s22, 1
      %p61 = por %p59, %p60
      %p62 = scmp.ne.s32.totalorder %s51, %s52
      %p63 = scmp.eq.s32.totalorder %s22, 0
      %p64 = por %p62, %p63
      %p65 = scmp.ne.s32.totalorder %s51, %s52
      %p66 = scmp.eq.s32.totalorder %s23, 1
      %p67 = por %p65, %p66
      %p69 = scmp.ne.s32.totalorder %s52, %s68
      %p70 = scmp.eq.s32.totalorder %s23, 0
      %p71 = por %p69, %p70
      %s72 = ssub.s32 %s24, %s43
      %s73 = ssub.s32 %s26, %s35
      %s74 = sor.u32 %s72, %s73
      %p75 = scmp.eq.s32.totalorder %s74, 0
      %s77 = sadd.s32 %s76, 1
      %s78 = scalar_select %p75, %s76, %s77
      %p81 = pneg %p75
      %p82 = scmp.eq.s32.totalorder %s17, 1
      %p83 = por %p81, %p82
      %p84 = scmp.ne.s32.totalorder %s76, %s79
      %p85 = scmp.eq.s32.totalorder %s17, 0
      %p86 = por %p84, %p85
      %p87 = scmp.ne.s32.totalorder %s76, %s79
      %p88 = scmp.eq.s32.totalorder %s22, 1
      %p89 = por %p87, %p88
      %p90 = scmp.ne.s32.totalorder %s79, %s80
      %p91 = scmp.eq.s32.totalorder %s22, 0
      %p92 = por %p90, %p91
      %p93 = scmp.ne.s32.totalorder %s79, %s80
      %p94 = scmp.eq.s32.totalorder %s23, 1
      %p95 = por %p93, %p94
      %p97 = scmp.ne.s32.totalorder %s80, %s96
      %p98 = scmp.eq.s32.totalorder %s23, 0
      %p99 = por %p97, %p98
      %s100 = ssub.s32 %s24, %s43
      %s101 = ssub.s32 %s26, %s35
      %s102 = sor.u32 %s100, %s101
      %p103 = scmp.eq.s32.totalorder %s102, 0
      %s105 = sadd.s32 %s104, 1
      %s106 = scalar_select %p103, %s104, %s105
      %p109 = pneg %p103
      %p110 = scmp.eq.s32.totalorder %s17, 1
      %p111 = por %p109, %p110
      %p112 = scmp.ne.s32.totalorder %s104, %s107
      %p113 = scmp.eq.s32.totalorder %s17, 0
      %p114 = por %p112, %p113
      %p115 = scmp.ne.s32.totalorder %s104, %s107
      %p116 = scmp.eq.s32.totalorder %s22, 1
      %p117 = por %p115, %p116
      %p118 = scmp.ne.s32.totalorder %s107, %s108
      %p119 = scmp.eq.s32.totalorder %s22, 0
      %p120 = por %p118, %p119
      %p121 = scmp.ne.s32.totalorder %s107, %s108
      %p122 = scmp.eq.s32.totalorder %s23, 1
      %p123 = por %p121, %p122
      %p125 = scmp.ne.s32.totalorder %s108, %s124
      %p126 = scmp.eq.s32.totalorder %s23, 0
      %p127 = por %p125, %p126
      %s128 = ssub.s32 %s24, %s43
      %s129 = ssub.s32 %s25, %s39
      %s130 = sor.u32 %s128, %s129
      %p131 = scmp.eq.s32.totalorder %s130, 0
      %s133 = sadd.s32 %s132, 1
      %s134 = scalar_select %p131, %s132, %s133
      %p137 = pneg %p131
      %p138 = scmp.eq.s32.totalorder %s17, 1
      %p139 = por %p137, %p138
      %p140 = scmp.ne.s32.totalorder %s132, %s135
      %p141 = scmp.eq.s32.totalorder %s17, 0
      %p142 = por %p140, %p141
      %p143 = scmp.ne.s32.totalorder %s132, %s135
      %p144 = scmp.eq.s32.totalorder %s22, 1
      %p145 = por %p143, %p144
      %p146 = scmp.ne.s32.totalorder %s135, %s136
      %p147 = scmp.eq.s32.totalorder %s22, 0
      %p148 = por %p146, %p147
      %p149 = scmp.ne.s32.totalorder %s135, %s136
      %p150 = scmp.eq.s32.totalorder %s23, 1
      %p151 = por %p149, %p150
      %p153 = scmp.ne.s32.totalorder %s136, %s152
      %p154 = scmp.eq.s32.totalorder %s23, 0
      %p155 = por %p153, %p154
      %s156 = ssub.s32 %s24, %s43
      %s157 = ssub.s32 %s25, %s39
      %s158 = sor.u32 %s156, %s157
      %p159 = scmp.eq.s32.totalorder %s158, 0
      %s161 = sadd.s32 %s160, 1
      %s162 = scalar_select %p159, %s160, %s161
      %p165 = pneg %p159
      %p166 = scmp.eq.s32.totalorder %s17, 1
      %p167 = por %p165, %p166
      %p168 = scmp.ne.s32.totalorder %s160, %s163
      %p169 = scmp.eq.s32.totalorder %s17, 0
      %p170 = por %p168, %p169
      %p171 = scmp.ne.s32.totalorder %s160, %s163
      %p172 = scmp.eq.s32.totalorder %s22, 1
      %p173 = por %p171, %p172
      %p174 = scmp.ne.s32.totalorder %s163, %s164
      %p175 = scmp.eq.s32.totalorder %s22, 0
      %p176 = por %p174, %p175
      %p177 = scmp.ne.s32.totalorder %s163, %s164
      %p178 = scmp.eq.s32.totalorder %s23, 1
      %p179 = por %p177, %p178
      %p181 = scmp.ne.s32.totalorder %s164, %s180
      %p182 = scmp.eq.s32.totalorder %s23, 0
      %p183 = por %p181, %p182
      %p184 = scmp.le.s32.totalorder 1, %s17
      %p185 = scmp.lt.s32.totalorder %s17, 3
      %p186 = pnand %p184, %p185
      %p187 = pneg %p186
      // Predicated region
      $region9: #{tpu_custom_call.1} parent=5 // pred_check
        _
      $region10: #{tpu_custom_call.1} parent=5 // pred_check_branch
        %189 = sbr.rel (%p186) target = $region12
      $region11: #{tpu_custom_call.1} parent=5 // pred_region
        %s190 = ssub.s32 %s17, 1
      $region12: #{tpu_custom_call.1} parent=5 // pred_fallthru
        _
      %p191 = scmp.lt.s32.totalorder %s17, 2
      // Predicated region
      $region13: #{tpu_custom_call.1} parent=5 // pred_check
        %p192 = pneg %p191
      $region14: #{tpu_custom_call.1} parent=5 // pred_check_branch
        %194 = sbr.rel (%p192) target = $region16
      $region15: #{tpu_custom_call.1} parent=5 // pred_region
        // Predicated region
        $region17: #{tpu_custom_call.1} parent=15 // pred_check
          %p195 = pneg %p58
        $region18: #{tpu_custom_call.1} parent=15 // pred_check_branch
          %197 = sbr.rel (%p195) target = $region20
        $region19: #{tpu_custom_call.1} parent=15 // pred_region
          %p198 = scmp.lt.s32.totalorder %s24, 1
          %s199 = scalar_select %p198, %s24, 1
          %p200 = scmp.lt.s32.totalorder %s25, 0
          %s201 = scalar_select %p200, %s25, 0
          %s202 = sadd.s32 %s201, %s199
          %s203 = smul.addr %s202, 4
          %s204 = scalar_lea.vmem %s0, %s203
        $region20: #{tpu_custom_call.1} parent=15 // pred_fallthru
          _
        // Predicated region
        $region21: #{tpu_custom_call.1} parent=15 // pred_check
          %p205 = pneg %p86
        $region22: #{tpu_custom_call.1} parent=15 // pred_check_branch
          %207 = sbr.rel (%p205) target = $region24
        $region23: #{tpu_custom_call.1} parent=15 // pred_region
          %s208 = smul.u32 2, %s26
          %p209 = scmp.lt.s32.totalorder %s24, 1
          %s210 = scalar_select %p209, %s24, 1
          %p211 = scmp.lt.s32.totalorder %s208, 1
          %s212 = scalar_select %p211, %s208, 1
          %s213 = smul.addr %s210, 2
          %s214 = sadd.s32 %s212, %s213
          %s215 = smul.addr %s214, 8
          %s216 = scalar_lea.vmem %s1, %s215
          %s217 = smul.u32 2, %s26
        $region24: #{tpu_custom_call.1} parent=15 // pred_fallthru
          _
        // Predicated region
        $region25: #{tpu_custom_call.1} parent=15 // pred_check
          %p218 = pneg %p114
        $region26: #{tpu_custom_call.1} parent=15 // pred_check_branch
          %220 = sbr.rel (%p218) target = $region28
        $region27: #{tpu_custom_call.1} parent=15 // pred_region
          %s221 = smul.u32 2, %s26
          %p222 = scmp.lt.s32.totalorder %s24, 1
          %s223 = scalar_select %p222, %s24, 1
          %p224 = scmp.lt.s32.totalorder %s221, 1
          %s225 = scalar_select %p224, %s221, 1
          %s226 = smul.addr %s223, 2
          %s227 = sadd.s32 %s225, %s226
          %s228 = smul.addr %s227, 8
          %s229 = scalar_lea.vmem %s2, %s228
          %s230 = smul.u32 2, %s26
        $region28: #{tpu_custom_call.1} parent=15 // pred_fallthru
          _
      $region16: #{tpu_custom_call.1} parent=5 // pred_fallthru
        _
      %p231 = scmp.le.s32.totalorder 1, %s17
      %p232 = scmp.lt.s32.totalorder %s17, 3
      %p233 = pnand %p231, %p232
      %p234 = pneg %p233
      // Predicated region
      $region29: #{tpu_custom_call.1} parent=5 // pred_check
        _
      $region30: #{tpu_custom_call.1} parent=5 // pred_check_branch
        %236 = sbr.rel (%p233) target = $region32
      $region31: #{tpu_custom_call.1} parent=5 // pred_region
        %s237 = ssub.s32 %s17, 1
        %p238 = scmp.lt.s32.totalorder %s27, 1
        %s239 = scalar_select %p238, %s27, 1
        %p240 = scmp.lt.s32.totalorder %s28, 0
        %s241 = scalar_select %p240, %s28, 0
        %s242 = sadd.s32 %s241, %s239
        %s243 = smul.addr %s242, 4
        %s244 = scalar_lea.vmem %s0, %s243
        %p245 = pneg %p64
        %p246 = pneg %p61
        %s247 = smul.u32 2, %s29
        %p248 = scmp.lt.s32.totalorder %s27, 1
        %s249 = scalar_select %p248, %s27, 1
        %p250 = scmp.lt.s32.totalorder %s247, 1
        %s251 = scalar_select %p250, %s247, 1
        %s252 = smul.addr %s249, 2
        %s253 = sadd.s32 %s251, %s252
        %s254 = smul.addr %s253, 8
        %s255 = scalar_lea.vmem %s1, %s254
        %p256 = pneg %p92
        %p257 = pneg %p89
        %s258 = smul.u32 2, %s29
        %p259 = scmp.lt.s32.totalorder %s27, 1
        %s260 = scalar_select %p259, %s27, 1
        %p261 = scmp.lt.s32.totalorder %s258, 1
        %s262 = scalar_select %p261, %s258, 1
        %s263 = smul.addr %s260, 2
        %s264 = sadd.s32 %s262, %s263
        %s265 = smul.addr %s264, 8
        %s266 = scalar_lea.vmem %s2, %s265
        %p267 = pneg %p120
        %p268 = pneg %p117
        %p269 = pneg %p148
        %p270 = pneg %p145
        %s271 = sand.u32 %s135, 1
        %s272 = scalar_lea.sflag [#allocation3], %s271
        %s273 = sand.u32 %s135, 1
        %s274 = smul.addr %s273, 4
        %s275 = scalar_lea.vmem [#allocation2], %s274
        %p276 = pneg %p176
        %p277 = pneg %p173
        %s278 = sand.u32 %s163, 1
        %s279 = scalar_lea.sflag [#allocation5], %s278
        %s280 = sand.u32 %s163, 1
        %s281 = smul.addr %s280, 4
        %s282 = scalar_lea.vmem [#allocation4], %s281
        %p283 = scmp.lt.s32.totalorder %s27, 1
        %s284 = scalar_select %p283, %s27, 1
        %p285 = scmp.lt.s32.totalorder %s28, 0
        %s286 = scalar_select %p285, %s28, 0
        %s287 = sadd.s32 %s286, %s284
        %s288 = smul.addr %s287, 4
        %s289 = scalar_lea.vmem %s0, %s288
        %s290 = smul.u32 2, %s29
        %p291 = scmp.lt.s32.totalorder %s27, 1
        %s292 = scalar_select %p291, %s27, 1
        %p293 = scmp.lt.s32.totalorder %s290, 1
        %s294 = scalar_select %p293, %s290, 1
        %s295 = smul.addr %s292, 2
        %s296 = sadd.s32 %s294, %s295
        %s297 = smul.addr %s296, 8
        %s298 = scalar_lea.vmem %s1, %s297
        %s299 = smul.u32 2, %s29
        %s300 = smul.u32 2, %s29
        %p301 = scmp.lt.s32.totalorder %s27, 1
        %s302 = scalar_select %p301, %s27, 1
        %p303 = scmp.lt.s32.totalorder %s300, 1
        %s304 = scalar_select %p303, %s300, 1
        %s305 = smul.addr %s302, 2
        %s306 = sadd.s32 %s304, %s305
        %s307 = smul.addr %s306, 8
        %s308 = scalar_lea.vmem %s2, %s307
        %s309 = smul.u32 2, %s29
        %p310 = scmp.eq.s32.totalorder %s29, 0
        // Predicated region
        $region33: #{tpu_custom_call.1} parent=31 // pred_check
          %p311 = pneg %p310
        $region34: #{tpu_custom_call.1} parent=31 // pred_check_branch
          %313 = sbr.rel (%p311) target = $region36
        $region35: #{tpu_custom_call.1} parent=31 // pred_region
          %vm314 = vcmask 60416
          %315 = vst.msk [vmem:[%s275] sm:$0xf] %vm314, 3e+38
          %316 = vst.msk [vmem:[%s282] sm:$0xf] %vm314, 0
        $region36: #{tpu_custom_call.1} parent=31 // pred_fallthru
          _
        %v317 = vld [vmem:[%s289] sm:$0x7]
        %v318 = vld [vmem:[%s298] sm:$0xff]
        %v319 = vld [vmem:[%s298 + $0x8] sm:$0xff]
        %v320 = vld [vmem:[%s308] sm:$0xff]
        %v321 = vld [vmem:[%s308 + $0x8] sm:$0xff]
        %v322 = vmul.f32 %v317, %v317
        %vm323 = vcmask 59392
        %v324 = vsel %vm323, %v322, 0.0
        %v325 = vrot.slane %v324, 4
        %v326 = vadd.f32 %v324, %v325
        %v327 = vrot.slane %v326, 2
        %v328 = vadd.f32 %v326, %v327
        %v329 = vrot.slane %v328, 1
        %v330 = vadd.f32 %v328, %v329
        %332 = vset.pattern.permute.xlu0 0
        %333 = vperm.xlu0 %332, %v320
        %v334 = vpop.permute.xlu0 %333
        %337 = vset.pattern.permute.xlu0 0
        %338 = vperm.xlu0 %337, %v321
        %v339 = vpop.permute.xlu0 %338
        %v341 = vadd.f32 %v334, %v330
        %v342 = vadd.f32 %v339, %v330
        %vm343 = vcmask 23552
        %v345 = vsel %vm343, %v318, 0
        %v348 = vsel %vm343, %v319, 0
        %vm350 = vcmask 1042432
        %v352 = vsel %vm350, %v317, 0
        %354 = vmatpush.msra.mxu0 0.0
        %355 = vmatpush.msra.mxu0 0.0
        %356 = vmatpush.msra.mxu0 0.0
        %357 = vmatpush.msra.mxu0 0.0
        %358 = vmatpush.msra.mxu0 0.0
        %359 = vmatpush.msra.mxu0 0.0
        %360 = vmatpush.msra.mxu0 0.0
        %361 = vmatpush.msra.mxu0 0.0
        %362 = vmatpush.msra.mxu0 0.0
        %363 = vmatpush.msra.mxu0 0.0
        %364 = vmatpush.msra.mxu0 0.0
        %365 = vmatpush.msra.mxu0 0.0
        %366 = vmatpush.msra.mxu0 0.0
        %367 = vmatpush.msra.mxu0 0.0
        %368 = vmatpush.msra.mxu0 0.0
        %369 = vmatpush.msra.mxu0 %v352
        %370 = vmatmul.f32.gmra.mxu0 %v345
        %v371 = vpop.f32.mrf.mxu0
        %v372 = vadd.f32 0.0, %v371
        %373 = vmatmul.f32.gmra.mxu0 %v348
        %v374 = vpop.f32.mrf.mxu0
        %v375 = vadd.f32 0.0, %v374
        %376 = vdwg.mxu0
        %v377 = vmul.f32 %v372, 2.0
        %v378 = vmul.f32 %v375, 2.0
        %v379 = vsub.f32 %v341, %v377
        %v380 = vsub.f32 %v342, %v378
        %v381 = vmax.f32 %v379, 0.0
        %v382 = vmax.f32 %v380, 0.0
        %v383 = vlaneseq
        %v384 = vshrl.u32 %v383, 7
        %v385 = vadd.s32 %v384, 8
        %s386 = smul.u32 %s29, 16
        %vm387 = vcmask 64512
        %v388 = vsel %vm387, %v381, inf
        %v389 = vsel %vm387, %v382, inf
        %v390 = vmin.f32 %v388, %v389
        %v391 = vrot.slane %v390, 4
        %v392 = vmin.f32 %v390, %v391
        %v393 = vrot.slane %v392, 2
        %v394 = vmin.f32 %v392, %v393
        %v395 = vrot.slane %v394, 1
        %v396 = vmin.f32 %v394, %v395
        %vm397 = vcmp.eq.f32.partialorder %v381, %v396
        %vm398 = vcmp.eq.f32.partialorder %v382, %v396
        %v399 = vsel %vm397, %v384, 16
        %v400 = vsel %vm398, %v385, 16
        %v401 = vsel %vm387, %v399, 2147483647
        %v402 = vsel %vm387, %v400, 2147483647
        %vm403 = vcmp.lt.s32.totalorder %v401, %v402
        %v404 = vsel %vm403, %v401, %v402
        %v405 = vrot.slane %v404, 4
        %vm406 = vcmp.lt.s32.totalorder %v404, %v405
        %v407 = vsel %vm406, %v404, %v405
        %v408 = vrot.slane %v407, 2
        %vm409 = vcmp.lt.s32.totalorder %v407, %v408
        %v410 = vsel %vm409, %v407, %v408
        %v411 = vrot.slane %v410, 1
        %vm412 = vcmp.lt.s32.totalorder %v410, %v411
        %v413 = vsel %vm412, %v410, %v411
        %vm414 = vcmp.eq.s32.totalorder %v384, 0
        %v415 = vsel %vm414, %v396, 3e+38
        %v416 = vstv %s386
        %v417 = vadd.s32 %v413, %v416
        %v418 = vsel %vm414, %v417, 0
        %vm419 = vcmp.eq.s32.totalorder %v384, %v413
        %vm420 = vcmp.eq.s32.totalorder %v385, %v413
        %v421 = vsel %vm419, 3e+38, %v381
        %v422 = vsel %vm420, 3e+38, %v382
        %v423 = vsel %vm387, %v421, inf
        %v424 = vsel %vm387, %v422, inf
        %v425 = vmin.f32 %v423, %v424
        %v426 = vrot.slane %v425, 4
        %v427 = vmin.f32 %v425, %v426
        %v428 = vrot.slane %v427, 2
        %v429 = vmin.f32 %v427, %v428
        %v430 = vrot.slane %v429, 1
        %v431 = vmin.f32 %v429, %v430
        %vm432 = vcmp.eq.f32.partialorder %v421, %v431
        %vm433 = vcmp.eq.f32.partialorder %v422, %v431
        %v434 = vsel %vm432, %v384, 16
        %v435 = vsel %vm433, %v385, 16
        %v436 = vsel %vm387, %v434, 2147483647
        %v437 = vsel %vm387, %v435, 2147483647
        %vm438 = vcmp.lt.s32.totalorder %v436, %v437
        %v439 = vsel %vm438, %v436, %v437
        %v440 = vrot.slane %v439, 4
        %vm441 = vcmp.lt.s32.totalorder %v439, %v440
        %v442 = vsel %vm441, %v439, %v440
        %v443 = vrot.slane %v442, 2
        %vm444 = vcmp.lt.s32.totalorder %v442, %v443
        %v445 = vsel %vm444, %v442, %v443
        %v446 = vrot.slane %v445, 1
        %vm447 = vcmp.lt.s32.totalorder %v445, %v446
        %v448 = vsel %vm447, %v445, %v446
        %vm449 = vcmp.eq.s32.totalorder %v384, 1
        %v450 = vsel %vm449, %v431, %v415
        %v451 = vadd.s32 %v448, %v416
        %v452 = vsel %vm449, %v451, %v418
        %vm453 = vcmp.eq.s32.totalorder %v384, %v448
        %vm454 = vcmp.eq.s32.totalorder %v385, %v448
        %v455 = vsel %vm453, 3e+38, %v421
        %v456 = vsel %vm454, 3e+38, %v422
        %v457 = vsel %vm387, %v455, inf
        %v458 = vsel %vm387, %v456, inf
        %v459 = vmin.f32 %v457, %v458
        %v460 = vrot.slane %v459, 4
        %v461 = vmin.f32 %v459, %v460
        %v462 = vrot.slane %v461, 2
        %v463 = vmin.f32 %v461, %v462
        %v464 = vrot.slane %v463, 1
        %v465 = vmin.f32 %v463, %v464
        %vm466 = vcmp.eq.f32.partialorder %v455, %v465
        %vm467 = vcmp.eq.f32.partialorder %v456, %v465
        %v468 = vsel %vm466, %v384, 16
        %v469 = vsel %vm467, %v385, 16
        %v470 = vsel %vm387, %v468, 2147483647
        %v471 = vsel %vm387, %v469, 2147483647
        %vm472 = vcmp.lt.s32.totalorder %v470, %v471
        %v473 = vsel %vm472, %v470, %v471
        %v474 = vrot.slane %v473, 4
        %vm475 = vcmp.lt.s32.totalorder %v473, %v474
        %v476 = vsel %vm475, %v473, %v474
        %v477 = vrot.slane %v476, 2
        %vm478 = vcmp.lt.s32.totalorder %v476, %v477
        %v479 = vsel %vm478, %v476, %v477
        %v480 = vrot.slane %v479, 1
        %vm481 = vcmp.lt.s32.totalorder %v479, %v480
        %v482 = vsel %vm481, %v479, %v480
        %vm483 = vcmp.eq.s32.totalorder %v384, 2
        %v484 = vsel %vm483, %v465, %v450
        %v485 = vadd.s32 %v482, %v416
        %v486 = vsel %vm483, %v485, %v452
        %vm487 = vcmp.eq.s32.totalorder %v384, %v482
        %vm488 = vcmp.eq.s32.totalorder %v385, %v482
        %v489 = vsel %vm487, 3e+38, %v455
        %v490 = vsel %vm488, 3e+38, %v456
        %v491 = vsel %vm387, %v489, inf
        %v492 = vsel %vm387, %v490, inf
        %v493 = vmin.f32 %v491, %v492
        %v494 = vrot.slane %v493, 4
        %v495 = vmin.f32 %v493, %v494
        %v496 = vrot.slane %v495, 2
        %v497 = vmin.f32 %v495, %v496
        %v498 = vrot.slane %v497, 1
        %v499 = vmin.f32 %v497, %v498
        %vm500 = vcmp.eq.f32.partialorder %v489, %v499
        %vm501 = vcmp.eq.f32.partialorder %v490, %v499
        %v502 = vsel %vm500, %v384, 16
        %v503 = vsel %vm501, %v385, 16
        %v504 = vsel %vm387, %v502, 2147483647
        %v505 = vsel %vm387, %v503, 2147483647
        %vm506 = vcmp.lt.s32.totalorder %v504, %v505
        %v507 = vsel %vm506, %v504, %v505
        %v508 = vrot.slane %v507, 4
        %vm509 = vcmp.lt.s32.totalorder %v507, %v508
        %v510 = vsel %vm509, %v507, %v508
        %v511 = vrot.slane %v510, 2
        %vm512 = vcmp.lt.s32.totalorder %v510, %v511
        %v513 = vsel %vm512, %v510, %v511
        %v514 = vrot.slane %v513, 1
        %vm515 = vcmp.lt.s32.totalorder %v513, %v514
        %v516 = vsel %vm515, %v513, %v514
        %vm517 = vcmp.eq.s32.totalorder %v384, 3
        %v518 = vsel %vm517, %v499, %v484
        %v519 = vadd.s32 %v516, %v416
        %v520 = vsel %vm517, %v519, %v486
        %v521 = vld [vmem:[%s275] sm:$0xf]
        %v523 = vrot.slane %v518, 4
        %vm525 = vcmask 1043456
        %v526 = vsel %vm525, %v521, %v523
        %v527 = vld [vmem:[%s282] sm:$0xf]
        %v528 = vrot.slane %v520, 4
        %v529 = vsel %vm525, %v527, %v528
        %v530 = vsel %vm387, %v526, inf
        %v531 = vrot.slane %v530, 4
        %v532 = vmin.f32 %v530, %v531
        %v533 = vrot.slane %v532, 2
        %v534 = vmin.f32 %v532, %v533
        %v535 = vrot.slane %v534, 1
        %v536 = vmin.f32 %v534, %v535
        %vm537 = vcmp.eq.f32.partialorder %v526, %v536
        %v538 = vsel %vm537, %v384, 8
        %v539 = vsel %vm387, %v538, 2147483647
        %v540 = vrot.slane %v539, 4
        %vm541 = vcmp.lt.s32.totalorder %v539, %v540
        %v542 = vsel %vm541, %v539, %v540
        %v543 = vrot.slane %v542, 2
        %vm544 = vcmp.lt.s32.totalorder %v542, %v543
        %v545 = vsel %vm544, %v542, %v543
        %v546 = vrot.slane %v545, 1
        %vm547 = vcmp.lt.s32.totalorder %v545, %v546
        %v548 = vsel %vm547, %v545, %v546
        %vm549 = vcmp.eq.s32.totalorder %v384, %v548
        %v550 = vsel %vm549, %v529, 2147483647
        %v551 = vsel %vm387, %v550, 2147483647
        %v552 = vrot.slane %v551, 4
        %vm553 = vcmp.lt.s32.totalorder %v551, %v552
        %v554 = vsel %vm553, %v551, %v552
        %v555 = vrot.slane %v554, 2
        %vm556 = vcmp.lt.s32.totalorder %v554, %v555
        %v557 = vsel %vm556, %v554, %v555
        %v558 = vrot.slane %v557, 1
        %vm559 = vcmp.lt.s32.totalorder %v557, %v558
        %v560 = vsel %vm559, %v557, %v558
        %v561 = vsel %vm414, %v536, 3e+38
        %v562 = vsel %vm414, %v560, 0
        %v563 = vsel %vm549, 3e+38, %v526
        %v564 = vsel %vm387, %v563, inf
        %v565 = vrot.slane %v564, 4
        %v566 = vmin.f32 %v564, %v565
        %v567 = vrot.slane %v566, 2
        %v568 = vmin.f32 %v566, %v567
        %v569 = vrot.slane %v568, 1
        %v570 = vmin.f32 %v568, %v569
        %vm571 = vcmp.eq.f32.partialorder %v563, %v570
        %v572 = vsel %vm571, %v384, 8
        %v573 = vsel %vm387, %v572, 2147483647
        %v574 = vrot.slane %v573, 4
        %vm575 = vcmp.lt.s32.totalorder %v573, %v574
        %v576 = vsel %vm575, %v573, %v574
        %v577 = vrot.slane %v576, 2
        %vm578 = vcmp.lt.s32.totalorder %v576, %v577
        %v579 = vsel %vm578, %v576, %v577
        %v580 = vrot.slane %v579, 1
        %vm581 = vcmp.lt.s32.totalorder %v579, %v580
        %v582 = vsel %vm581, %v579, %v580
        %vm583 = vcmp.eq.s32.totalorder %v384, %v582
        %v584 = vsel %vm583, %v529, 2147483647
        %v585 = vsel %vm387, %v584, 2147483647
        %v586 = vrot.slane %v585, 4
        %vm587 = vcmp.lt.s32.totalorder %v585, %v586
        %v588 = vsel %vm587, %v585, %v586
        %v589 = vrot.slane %v588, 2
        %vm590 = vcmp.lt.s32.totalorder %v588, %v589
        %v591 = vsel %vm590, %v588, %v589
        %v592 = vrot.slane %v591, 1
        %vm593 = vcmp.lt.s32.totalorder %v591, %v592
        %v594 = vsel %vm593, %v591, %v592
        %v595 = vsel %vm449, %v570, %v561
        %v596 = vsel %vm449, %v594, %v562
        %v597 = vsel %vm583, 3e+38, %v563
        %v598 = vsel %vm387, %v597, inf
        %v599 = vrot.slane %v598, 4
        %v600 = vmin.f32 %v598, %v599
        %v601 = vrot.slane %v600, 2
        %v602 = vmin.f32 %v600, %v601
        %v603 = vrot.slane %v602, 1
        %v604 = vmin.f32 %v602, %v603
        %vm605 = vcmp.eq.f32.partialorder %v597, %v604
        %v606 = vsel %vm605, %v384, 8
        %v607 = vsel %vm387, %v606, 2147483647
        %v608 = vrot.slane %v607, 4
        %vm609 = vcmp.lt.s32.totalorder %v607, %v608
        %v610 = vsel %vm609, %v607, %v608
        %v611 = vrot.slane %v610, 2
        %vm612 = vcmp.lt.s32.totalorder %v610, %v611
        %v613 = vsel %vm612, %v610, %v611
        %v614 = vrot.slane %v613, 1
        %vm615 = vcmp.lt.s32.totalorder %v613, %v614
        %v616 = vsel %vm615, %v613, %v614
        %vm617 = vcmp.eq.s32.totalorder %v384, %v616
        %v618 = vsel %vm617, %v529, 2147483647
        %v619 = vsel %vm387, %v618, 2147483647
        %v620 = vrot.slane %v619, 4
        %vm621 = vcmp.lt.s32.totalorder %v619, %v620
        %v622 = vsel %vm621, %v619, %v620
        %v623 = vrot.slane %v622, 2
        %vm624 = vcmp.lt.s32.totalorder %v622, %v623
        %v625 = vsel %vm624, %v622, %v623
        %v626 = vrot.slane %v625, 1
        %vm627 = vcmp.lt.s32.totalorder %v625, %v626
        %v628 = vsel %vm627, %v625, %v626
        %v629 = vsel %vm483, %v604, %v595
        %v630 = vsel %vm483, %v628, %v596
        %v631 = vsel %vm617, 3e+38, %v597
        %v632 = vsel %vm387, %v631, inf
        %v633 = vrot.slane %v632, 4
        %v634 = vmin.f32 %v632, %v633
        %v635 = vrot.slane %v634, 2
        %v636 = vmin.f32 %v634, %v635
        %v637 = vrot.slane %v636, 1
        %v638 = vmin.f32 %v636, %v637
        %vm639 = vcmp.eq.f32.partialorder %v631, %v638
        %v640 = vsel %vm639, %v384, 8
        %v641 = vsel %vm387, %v640, 2147483647
        %v642 = vrot.slane %v641, 4
        %vm643 = vcmp.lt.s32.totalorder %v641, %v642
        %v644 = vsel %vm643, %v641, %v642
        %v645 = vrot.slane %v644, 2
        %vm646 = vcmp.lt.s32.totalorder %v644, %v645
        %v647 = vsel %vm646, %v644, %v645
        %v648 = vrot.slane %v647, 1
        %vm649 = vcmp.lt.s32.totalorder %v647, %v648
        %v650 = vsel %vm649, %v647, %v648
        %vm651 = vcmp.eq.s32.totalorder %v384, %v650
        %v652 = vsel %vm651, %v529, 2147483647
        %v653 = vsel %vm387, %v652, 2147483647
        %v654 = vrot.slane %v653, 4
        %vm655 = vcmp.lt.s32.totalorder %v653, %v654
        %v656 = vsel %vm655, %v653, %v654
        %v657 = vrot.slane %v656, 2
        %vm658 = vcmp.lt.s32.totalorder %v656, %v657
        %v659 = vsel %vm658, %v656, %v657
        %v660 = vrot.slane %v659, 1
        %vm661 = vcmp.lt.s32.totalorder %v659, %v660
        %v662 = vsel %vm661, %v659, %v660
        %v663 = vsel %vm517, %v638, %v629
        %v664 = vsel %vm517, %v662, %v630
        %vm665 = vcmask 60416
        %666 = vst.msk [vmem:[%s275] sm:$0xf] %vm665, %v663
        %667 = vst.msk [vmem:[%s282] sm:$0xf] %vm665, %v664
        %s668 = sand.u32 %s135, 1
        %s669 = scalar_lea.sflag [#allocation3], %s668
        %s670 = sand.u32 %s135, 1
        %s671 = smul.addr %s670, 4
        %s672 = scalar_lea.vmem [#allocation2], %s671
        %s673 = sand.u32 %s163, 1
        %s674 = scalar_lea.sflag [#allocation5], %s673
        %s675 = sand.u32 %s163, 1
        %s676 = smul.addr %s675, 4
        %s677 = scalar_lea.vmem [#allocation4], %s676
        // Predicated region
        $region37: #{tpu_custom_call.1} parent=31 // pred_check
          %p678 = pneg %p145
        $region38: #{tpu_custom_call.1} parent=31 // pred_check_branch
          %680 = sbr.rel (%p678) target = $region40
        $region39: #{tpu_custom_call.1} parent=31 // pred_region
          %682 = vsyncadd %s669, 0
          %s683 = sadd.s32 %s28, %s27
          %s684 = smul.addr %s683, 4
          %s685 = scalar_lea.hbm %s3, %s684
          %s687 = sshll.u32 %s672, 4
          %s688 = int_to_ptr.vmem [resolvable:$true] %s687
          %s689 = sshll.u32 %s685, 4
          %s690 = int_to_ptr.hbm [resolvable:$true] %s689
          %692 = dma.vmem_to_hbm [thread:$0]  %s688, 64, %s690, %s669
        $region40: #{tpu_custom_call.1} parent=31 // pred_fallthru
          _
        // Predicated region
        $region41: #{tpu_custom_call.1} parent=31 // pred_check
          %p693 = pneg %p173
        $region42: #{tpu_custom_call.1} parent=31 // pred_check_branch
          %695 = sbr.rel (%p693) target = $region44
        $region43: #{tpu_custom_call.1} parent=31 // pred_region
          %697 = vsyncadd %s674, 0
          %s698 = sadd.s32 %s28, %s27
          %s699 = smul.addr %s698, 4
          %s700 = scalar_lea.hbm %s4, %s699
          %s702 = sshll.u32 %s677, 4
          %s703 = int_to_ptr.vmem [resolvable:$true] %s702
          %s704 = sshll.u32 %s700, 4
          %s705 = int_to_ptr.hbm [resolvable:$true] %s704
          %707 = dma.vmem_to_hbm [thread:$0]  %s703, 64, %s705, %s674
        $region44: #{tpu_custom_call.1} parent=31 // pred_fallthru
          _
      $region32: #{tpu_custom_call.1} parent=5 // pred_fallthru
        _
      %p708 = scmp.le.s32.totalorder 2, %s17
      // Predicated region
      $region45: #{tpu_custom_call.1} parent=5 // pred_check
        %p709 = pneg %p708
      $region46: #{tpu_custom_call.1} parent=5 // pred_check_branch
        %711 = sbr.rel (%p709) target = $region48
      $region47: #{tpu_custom_call.1} parent=5 // pred_region
        %s712 = ssub.s32 %s17, 2
        // Predicated region
        $region49: #{tpu_custom_call.1} parent=47 // pred_check
          %p713 = pneg %p151
        $region50: #{tpu_custom_call.1} parent=47 // pred_check_branch
          %715 = sbr.rel (%p713) target = $region52
        $region51: #{tpu_custom_call.1} parent=47 // pred_region
          %s716 = sand.u32 %s136, 1
          %s717 = scalar_lea.sflag [#allocation3], %s716
          %s718 = sand.u32 %s136, 1
          %s719 = smul.addr %s718, 4
          %s720 = scalar_lea.vmem [#allocation2], %s719
          %722 = dma.done %s717, 64
        $region52: #{tpu_custom_call.1} parent=47 // pred_fallthru
          _
        // Predicated region
        $region53: #{tpu_custom_call.1} parent=47 // pred_check
          %p723 = pneg %p179
        $region54: #{tpu_custom_call.1} parent=47 // pred_check_branch
          %725 = sbr.rel (%p723) target = $region56
        $region55: #{tpu_custom_call.1} parent=47 // pred_region
          %s726 = sand.u32 %s164, 1
          %s727 = scalar_lea.sflag [#allocation5], %s726
          %s728 = sand.u32 %s164, 1
          %s729 = smul.addr %s728, 4
          %s730 = scalar_lea.vmem [#allocation4], %s729
          %732 = dma.done %s727, 64
        $region56: #{tpu_custom_call.1} parent=47 // pred_fallthru
          _
      $region48: #{tpu_custom_call.1} parent=5 // pred_fallthru
        _
    $region6: #{tpu_custom_call.1} parent=1 // loop_footer
      %s21 = sadd.s32 1, %s17
    $region7: #{tpu_custom_call.1} parent=1 // loop_footer_branch
      %16 = sbr.rel target = $region3
    $region8: #{tpu_custom_call.1} parent=1 // loop_exit
      _
    %733 = vsyncpa [#allocation3], 1
    %s734 = scalar_lea.sflag [#allocation3], 1
    %735 = vsyncpa %s734, 1
    %736 = vsyncpa [#allocation5], 1
    %s737 = scalar_lea.sflag [#allocation5], 1
    %738 = vsyncpa %s737, 1

</llo_original>
